<compile_context>
chip_gen: v5e
topology: v5e:2x2
jax: 0.10.0
libtpu: 0.0.40
codegen_flags: <defaults>
</compile_context>

<pallas_src>
import functools

import jax
import jax.numpy as jnp
import numpy as np
from jax.experimental import pallas as pl
from jax.experimental.pallas import tpu as pltpu


def _gaussian_1d_np(kernel_size: int) -> np.ndarray:
    """1-D factor of the module's Gaussian (outer(g1, g1) == its 2-D kernel)."""
    mean = (kernel_size - 1) / 2.0
    variance = (kernel_size / 6.0) ** 2.0
    k = np.arange(kernel_size, dtype=np.float64)
    g1 = np.exp(-((k - mean) ** 2) / (2.0 * variance))
    return g1 / g1.sum()


def _gaussian_2d_np(kernel_size: int) -> np.ndarray:
    """2-D kernel exactly as the PyTorch __init__ builds it (reference only)."""
    mean = (kernel_size - 1) / 2.0
    variance = (kernel_size / 6.0) ** 2.0
    x = np.arange(kernel_size, dtype=np.float32)
    xg = np.tile(x, kernel_size).reshape(kernel_size, kernel_size)
    yg = xg.T
    g = np.exp(-((xg - mean) ** 2 + (yg - mean) ** 2) / (2.0 * variance))
    return (g / g.sum()).astype(np.float32)


def _round_up(x: int, m: int) -> int:
    return (x + m - 1) // m * m


def _tensorcores_per_chip() -> int:
    """2 on v7x-class chips (batch sharding across cores pays off), else 1."""
    try:
        dev = jax.devices()[0]
        if dev.platform != "tpu":
            return 1
        kind = dev.device_kind.lower()
        if "v7" in kind or "7x" in kind:
            return 2
    except Exception:  # defensive: fall back to the single-core layout
        pass
    return 1


def _shift(x, s: int, axis: int):
    """result[i] = x[(i - s) mod n] along `axis` (jnp.roll semantics)."""
    n = x.shape[axis]
    s = s % n
    if s == 0:
        return x
    return pltpu.roll(x, s, axis)


def _sep_pass(x, w, pad: int, K: int, axis: int):
    """out[i] = sum_t w[t] * x[(i + t - pad) mod n] along `axis`.

    Exploits the Gaussian's exact symmetry w[t] == w[K-1-t]:
    (K-1)/2 paired taps + centre tap  ->  3 muls + 4 adds for K=5.
    """
    acc = None
    for t in range(K // 2):
        pair = _shift(x, pad - t, axis) + _shift(x, pad - (K - 1 - t), axis)
        term = w[t] * pair
        acc = term if acc is None else acc + term
    mid = K // 2
    centre = w[mid] * _shift(x, pad - mid, axis)
    return centre if acc is None else acc + centre


def _gauss_kernel(x_ref, o_ref, xbuf_ref, *, w1d, K, pad, H, W, Ho, Wo, HPR, WPR):
    # x_ref : (NB, C, H,  W )   input planes
    # o_ref : (NB, C, Ho, Wo)   exact conv output (no lane-padded slab)
    # xbuf  : (NB, C, HPR, WPR) f32 working slab; data at [:H,:W], zeros elsewhere
    NB, C = x_ref.shape[0], x_ref.shape[1]

    # Fused zero padding — the three stores below tile the slab exactly once:
    #   rows [H:HPR)            -> bottom pad + wrap rows for the vertical taps
    #   rows [:H), lanes [W:)   -> right pad + wrap lanes for the horizontal taps
    #   rows [:H), lanes [:W)   -> the data itself ((0,0)-aligned store)
    xbuf_ref[:, :, H:, :] = jnp.zeros((NB, C, HPR - H, WPR), jnp.float32)
    xbuf_ref[:, :, :H, W:] = jnp.zeros((NB, C, H, WPR - W), jnp.float32)
    xbuf_ref[:, :, :H, :W] = x_ref[...].astype(jnp.float32)

    slab = xbuf_ref[...]                               # (NB, C, HPR, WPR) f32
    h = _sep_pass(slab, w1d, pad, K, axis=3)           # horizontal (lane) taps
    o = _sep_pass(h, w1d, pad, K, axis=2)              # vertical (sublane) taps
    o_ref[...] = o[:, :, :Ho, :Wo].astype(o_ref.dtype)


@functools.partial(jax.jit, static_argnames=("kernel_size", "stride", "padding"))
def gaussian_filter(x, kernel_size: int = 5, stride: int = 1, padding: int = 4):
    """Depthwise Gaussian blur matching GaussianFilter.forward (NCHW)."""
    assert stride == 1, "reference module uses stride=1"
    N, C, H, W = x.shape
    K, pad = kernel_size, padding
    assert K % 2 == 1

    Ho = H + 2 * pad - K + 1
    Wo = W + 2 * pad - K + 1

    # Working slab: data at the origin; the zero halo on the high side absorbs both
    # the right/bottom conv padding and the wrapped (negative-index) left/top taps.
    HPR = _round_up(H + pad, 8)
    WPR = _round_up(W + pad, 128)
    # TODO(synk): for realistic image sizes add an H-tiling grid axis (halo rows
    # re-read) and set vmem_limit_bytes against v7x's 64 MiB/TC instead of holding
    # one monolithic (N*C, HPR, WPR) slab in VMEM.

    w1d = tuple(float(v) for v in _gaussian_1d_np(K))

    # Single grid step on single-TC chips (v5e/v6e: avoid per-step overhead + extra
    # DMA issues); keep the batch as a "parallel" grid axis only where a second
    # TensorCore exists (v7x) so the two batch elements shard across cores.
    grid_n = N if (_tensorcores_per_chip() >= 2 and N > 1) else 1
    NB = N // grid_n

    kernel = functools.partial(
        _gauss_kernel, w1d=w1d, K=K, pad=pad, H=H, W=W, Ho=Ho, Wo=Wo,
        HPR=HPR, WPR=WPR)

    return pl.pallas_call(
        kernel,
        out_shape=jax.ShapeDtypeStruct((N, C, Ho, Wo), x.dtype),
        grid_spec=pltpu.PrefetchScalarGridSpec(
            num_scalar_prefetch=0,
            grid=(grid_n,),
            in_specs=[pl.BlockSpec((NB, C, H, W), lambda n: (n, 0, 0, 0))],
            out_specs=pl.BlockSpec((NB, C, Ho, Wo), lambda n: (n, 0, 0, 0)),
            scratch_shapes=[pltpu.VMEM((NB, C, HPR, WPR), jnp.float32)],
        ),
        compiler_params=pltpu.CompilerParams(
            dimension_semantics=("parallel",)),
    )(x)


def _reference(x, kernel_size=5, padding=4):
    """Pure-JAX reference: grouped (depthwise) conv with the module's 2-D kernel."""
    g = jnp.asarray(_gaussian_2d_np(kernel_size))       # (K, K) float32
    C = x.shape[1]
    w = jnp.broadcast_to(g[None, None], (C, 1, kernel_size, kernel_size))
    return jax.lax.conv_general_dilated(
        x, w, window_strides=(1, 1),
        padding=((padding, padding), (padding, padding)),
        dimension_numbers=("NCHW", "OIHW", "NCHW"),
        feature_group_count=C,
        precision=jax.lax.Precision.HIGHEST)


if __name__ == "__main__":
    key = jax.random.PRNGKey(0)
    # Module is hard-wired to 3 input/output channels (Conv2d(3, 3, groups=3)).
    x = jax.random.normal(key, (2, 3, 16, 16), dtype=jnp.float32)

    out = jax.block_until_ready(gaussian_filter(x))
    ref = jax.block_until_ready(_reference(x))

    assert out.shape == (2, 3, 20, 20), out.shape
    np.testing.assert_allclose(np.asarray(out), np.asarray(ref), rtol=1e-5, atol=1e-5)

    print("KERNEL_OK")
</pallas_src>

<mosaic_0001>
module attributes {stable_mosaic.version = 11 : i64} {
  func.func @_gauss_kernel(%arg0: i32, %arg1: memref<2x3x16x16xf32, #tpu.memory_space<vmem>>, %arg2: memref<2x3x20x20xf32, #tpu.memory_space<vmem>>, %arg3: memref<2x3x24x128xf32, #tpu.memory_space<vmem>>) attributes {dimension_semantics = [#tpu.dimension_semantics<parallel>], iteration_bounds = array<i64: 1>, scalar_prefetch = 0 : i64, scratch_operands = 1 : i64, tpu.core_type = #tpu.core_type<tc>, window_params = [{transform_indices = @transform_0, window_bounds = array<i64: 2, 3, 16, 16>}, {transform_indices = @transform_1, window_bounds = array<i64: 2, 3, 20, 20>}]} {
    %cst = arith.constant 0.000000e+00 : f32
    %0 = vector.broadcast %cst : f32 to vector<2x3x8x128xf32>
    %c0 = arith.constant 0 : index
    %c0_0 = arith.constant 0 : index
    %c16 = arith.constant 16 : index
    %c0_1 = arith.constant 0 : index
    %1 = vector.load %arg3[%c0, %c0_0, %c16, %c0_1] : memref<2x3x24x128xf32, #tpu.memory_space<vmem>>, vector<2x3x8x128xf32>
    tpu.vector_store %arg3[%c0, %c0_0, %c16, %c0_1], %0 {strides = array<i32>} : memref<2x3x24x128xf32, #tpu.memory_space<vmem>>, vector<2x3x8x128xf32>,
    %cst_2 = arith.constant 0.000000e+00 : f32
    %2 = vector.broadcast %cst_2 : f32 to vector<2x3x16x112xf32>
    %c0_3 = arith.constant 0 : index
    %c0_4 = arith.constant 0 : index
    %c0_5 = arith.constant 0 : index
    %c16_6 = arith.constant 16 : index
    %3 = vector.load %arg3[%c0_3, %c0_4, %c0_5, %c16_6] : memref<2x3x24x128xf32, #tpu.memory_space<vmem>>, vector<2x3x16x112xf32>
    tpu.vector_store %arg3[%c0_3, %c0_4, %c0_5, %c16_6], %2 {strides = array<i32>} : memref<2x3x24x128xf32, #tpu.memory_space<vmem>>, vector<2x3x16x112xf32>,
    %c0_7 = arith.constant 0 : index
    %c0_8 = arith.constant 0 : index
    %c0_9 = arith.constant 0 : index
    %c0_10 = arith.constant 0 : index
    %4 = vector.load %arg1[%c0_7, %c0_8, %c0_9, %c0_10] : memref<2x3x16x16xf32, #tpu.memory_space<vmem>>, vector<2x3x16x16xf32>
    %c0_11 = arith.constant 0 : index
    %c0_12 = arith.constant 0 : index
    %c0_13 = arith.constant 0 : index
    %c0_14 = arith.constant 0 : index
    %5 = vector.load %arg3[%c0_11, %c0_12, %c0_13, %c0_14] : memref<2x3x24x128xf32, #tpu.memory_space<vmem>>, vector<2x3x16x16xf32>
    tpu.vector_store %arg3[%c0_11, %c0_12, %c0_13, %c0_14], %4 {strides = array<i32>} : memref<2x3x24x128xf32, #tpu.memory_space<vmem>>, vector<2x3x16x16xf32>,
    %c0_15 = arith.constant 0 : index
    %c0_16 = arith.constant 0 : index
    %c0_17 = arith.constant 0 : index
    %c0_18 = arith.constant 0 : index
    %6 = vector.load %arg3[%c0_15, %c0_16, %c0_17, %c0_18] : memref<2x3x24x128xf32, #tpu.memory_space<vmem>>, vector<2x3x24x128xf32>
    %c4_i32 = arith.constant 4 : i32
    %7 = tpu.dynamic_rotate %6 by %c4_i32 dim 3 : vector<2x3x24x128xf32>, i32 -> vector<2x3x24x128xf32>
    %8 = arith.addf %7, %6 : vector<2x3x24x128xf32>
    %cst_19 = arith.constant 0.0269131567 : f32
    %9 = vector.broadcast %cst_19 : f32 to vector<2x3x24x128xf32>
    %10 = arith.mulf %9, %8 : vector<2x3x24x128xf32>
    %c3_i32 = arith.constant 3 : i32
    %11 = tpu.dynamic_rotate %6 by %c3_i32 dim 3 : vector<2x3x24x128xf32>, i32 -> vector<2x3x24x128xf32>
    %c1_i32 = arith.constant 1 : i32
    %12 = tpu.dynamic_rotate %6 by %c1_i32 dim 3 : vector<2x3x24x128xf32>, i32 -> vector<2x3x24x128xf32>
    %13 = arith.addf %11, %12 : vector<2x3x24x128xf32>
    %cst_20 = arith.constant 0.233367682 : f32
    %14 = vector.broadcast %cst_20 : f32 to vector<2x3x24x128xf32>
    %15 = arith.mulf %14, %13 : vector<2x3x24x128xf32>
    %16 = arith.addf %10, %15 : vector<2x3x24x128xf32>
    %c2_i32 = arith.constant 2 : i32
    %17 = tpu.dynamic_rotate %6 by %c2_i32 dim 3 : vector<2x3x24x128xf32>, i32 -> vector<2x3x24x128xf32>
    %cst_21 = arith.constant 0.479438305 : f32
    %18 = vector.broadcast %cst_21 : f32 to vector<2x3x24x128xf32>
    %19 = arith.mulf %18, %17 : vector<2x3x24x128xf32>
    %20 = arith.addf %16, %19 : vector<2x3x24x128xf32>
    %c4_i32_22 = arith.constant 4 : i32
    %21 = tpu.dynamic_rotate %20 by %c4_i32_22 dim 2 : vector<2x3x24x128xf32>, i32 -> vector<2x3x24x128xf32>
    %22 = arith.addf %21, %20 : vector<2x3x24x128xf32>
    %cst_23 = arith.constant 0.0269131567 : f32
    %23 = vector.broadcast %cst_23 : f32 to vector<2x3x24x128xf32>
    %24 = arith.mulf %23, %22 : vector<2x3x24x128xf32>
    %c3_i32_24 = arith.constant 3 : i32
    %25 = tpu.dynamic_rotate %20 by %c3_i32_24 dim 2 : vector<2x3x24x128xf32>, i32 -> vector<2x3x24x128xf32>
    %c1_i32_25 = arith.constant 1 : i32
    %26 = tpu.dynamic_rotate %20 by %c1_i32_25 dim 2 : vector<2x3x24x128xf32>, i32 -> vector<2x3x24x128xf32>
    %27 = arith.addf %25, %26 : vector<2x3x24x128xf32>
    %cst_26 = arith.constant 0.233367682 : f32
    %28 = vector.broadcast %cst_26 : f32 to vector<2x3x24x128xf32>
    %29 = arith.mulf %28, %27 : vector<2x3x24x128xf32>
    %30 = arith.addf %24, %29 : vector<2x3x24x128xf32>
    %c2_i32_27 = arith.constant 2 : i32
    %31 = tpu.dynamic_rotate %20 by %c2_i32_27 dim 2 : vector<2x3x24x128xf32>, i32 -> vector<2x3x24x128xf32>
    %cst_28 = arith.constant 0.479438305 : f32
    %32 = vector.broadcast %cst_28 : f32 to vector<2x3x24x128xf32>
    %33 = arith.mulf %32, %31 : vector<2x3x24x128xf32>
    %34 = arith.addf %30, %33 : vector<2x3x24x128xf32>
    %35 = vector.extract_strided_slice %34 {offsets = [0, 0, 0, 0], sizes = [2, 3, 20, 20], strides = [1, 1, 1, 1]} : vector<2x3x24x128xf32> to vector<2x3x20x20xf32>
    %c0_29 = arith.constant 0 : index
    %c0_30 = arith.constant 0 : index
    %c0_31 = arith.constant 0 : index
    %c0_32 = arith.constant 0 : index
    %36 = vector.load %arg2[%c0_29, %c0_30, %c0_31, %c0_32] : memref<2x3x20x20xf32, #tpu.memory_space<vmem>>, vector<2x3x20x20xf32>
    tpu.vector_store %arg2[%c0_29, %c0_30, %c0_31, %c0_32], %35 {strides = array<i32>} : memref<2x3x20x20xf32, #tpu.memory_space<vmem>>, vector<2x3x20x20xf32>,
    return
  }
  func.func @transform_0(%arg0: i32) -> (i32, i32, i32, i32) {
    %c0_i32 = arith.constant 0 : i32
    %c0_i32_0 = arith.constant 0 : i32
    %c0_i32_1 = arith.constant 0 : i32
    %c0_i32_2 = arith.constant 0 : i32
    return %arg0, %c0_i32, %c0_i32_0, %c0_i32_1 : i32, i32, i32, i32
  }
  func.func @transform_1(%arg0: i32) -> (i32, i32, i32, i32) {
    %c0_i32 = arith.constant 0 : i32
    %c0_i32_0 = arith.constant 0 : i32
    %c0_i32_1 = arith.constant 0 : i32
    %c0_i32_2 = arith.constant 0 : i32
    return %arg0, %c0_i32, %c0_i32_0, %c0_i32_1 : i32, i32, i32, i32
  }
}

</mosaic_0001>

<llo_original>
// kernel: gaussian_filter.1
$region0: #{gaussian_filter.1}
  #allocation0 [shape = 'u32[]', space=smem, size = 0x4, offset = 0x4, fixed_abs, tag = 'smem constant byte address 0x4 - core index']
  #allocation1 [shape = 'u32[72,128]{1,0:T(1,128)}', space=vmem, size = 0x9000, scoped, tag = 'internal scratch']
  #allocation2 [shape = 'f32[2,3,24,128]{3,2,1,0:T(8,128)}', space=vmem, size = 0x12000, scoped, tag = 'scratch operand']
  %s0 = inlined_call_operand.hbm [shape: f32[2,3,16,16], index: 0, kind: input, shape index: {}]
  %s1 = inlined_call_operand.vmem [shape: f32[2,3,20,20], index: 1, kind: output, shape index: {}]
  %s2 = sld [smem:[#allocation0]]
  $region18: #{gaussian_filter.1} parent=0
    _
  %s4 = ssub.s32 1, %s2
  %s5 = scalar_select 0, %s4, %s2
  $region1: #{gaussian_filter.1} parent=0
    #allocation3 [shape = 'u8[49152]{0}', space=vmem, size = 0xc000, scoped, tag = 'input window, operand 0, single buffered']
    #allocation4 [shape = 's32[1]{0}', space=sflag, size = 0x4, scoped, tag = 'scoped memory for gaussian_filter.1']
    %6 = vsyncpa [#allocation4], 0
    // Predicated region
    $region2: #{gaussian_filter.1} parent=1 // pred_check
      _
    $region3: #{gaussian_filter.1} parent=1 // pred_check_branch
      %8 = sbr.rel (0) target = $region5
    $region4: #{gaussian_filter.1} parent=1 // pred_region
      %10 = vsyncadd [#allocation4], 0
      %s11 = sshll.u32 %s0, 4
      %s12 = int_to_ptr.hbm [resolvable:$true] %s11
      %s13 = sshll.u32 [#allocation3], 4
      %s14 = int_to_ptr.vmem [resolvable:$true] %s13
      %19 = dma.hbm_to_vmem [thread:$0]  %s12, 1536, %s14, [#allocation4], 128, 128, 8
    $region5: #{gaussian_filter.1} parent=1 // pred_fallthru
      _
    // Predicated region
    $region6: #{gaussian_filter.1} parent=1 // pred_check
      _
    $region7: #{gaussian_filter.1} parent=1 // pred_check_branch
      %21 = sbr.rel (0) target = $region9
    $region8: #{gaussian_filter.1} parent=1 // pred_region
      %23 = dma.done [#allocation4], 1536
    $region9: #{gaussian_filter.1} parent=1 // pred_fallthru
      _
    %24 = vst [vmem:[#allocation2 + $0x10] sm:$0xff] 0.0
    %25 = vst [vmem:[#allocation2 + $0x28] sm:$0xff] 0.0
    %26 = vst [vmem:[#allocation2 + $0x40] sm:$0xff] 0.0
    %27 = vst [vmem:[#allocation2 + $0x58] sm:$0xff] 0.0
    %28 = vst [vmem:[#allocation2 + $0x70] sm:$0xff] 0.0
    %29 = vst [vmem:[#allocation2 + $0x88] sm:$0xff] 0.0
    %vm30 = vcmask 1047680
    %31 = vst.msk [vmem:[#allocation2] sm:$0xff] %vm30, 0.0
    %32 = vst.msk [vmem:[#allocation2 + $0x8] sm:$0xff] %vm30, 0.0
    %33 = vst.msk [vmem:[#allocation2 + $0x18] sm:$0xff] %vm30, 0.0
    %34 = vst.msk [vmem:[#allocation2 + $0x20] sm:$0xff] %vm30, 0.0
    %35 = vst.msk [vmem:[#allocation2 + $0x30] sm:$0xff] %vm30, 0.0
    %36 = vst.msk [vmem:[#allocation2 + $0x38] sm:$0xff] %vm30, 0.0
    %37 = vst.msk [vmem:[#allocation2 + $0x48] sm:$0xff] %vm30, 0.0
    %38 = vst.msk [vmem:[#allocation2 + $0x50] sm:$0xff] %vm30, 0.0
    %39 = vst.msk [vmem:[#allocation2 + $0x60] sm:$0xff] %vm30, 0.0
    %40 = vst.msk [vmem:[#allocation2 + $0x68] sm:$0xff] %vm30, 0.0
    %41 = vst.msk [vmem:[#allocation2 + $0x78] sm:$0xff] %vm30, 0.0
    %42 = vst.msk [vmem:[#allocation2 + $0x80] sm:$0xff] %vm30, 0.0
    %v43 = vld [vmem:[#allocation3] sm:$0xff]
    %v44 = vld [vmem:[#allocation3 + $0x8] sm:$0xff]
    %v45 = vld [vmem:[#allocation3 + $0x10] sm:$0xff]
    %v46 = vld [vmem:[#allocation3 + $0x18] sm:$0xff]
    %v47 = vld [vmem:[#allocation3 + $0x20] sm:$0xff]
    %v48 = vld [vmem:[#allocation3 + $0x28] sm:$0xff]
    %v49 = vld [vmem:[#allocation3 + $0x30] sm:$0xff]
    %v50 = vld [vmem:[#allocation3 + $0x38] sm:$0xff]
    %v51 = vld [vmem:[#allocation3 + $0x40] sm:$0xff]
    %v52 = vld [vmem:[#allocation3 + $0x48] sm:$0xff]
    %v53 = vld [vmem:[#allocation3 + $0x50] sm:$0xff]
    %v54 = vld [vmem:[#allocation3 + $0x58] sm:$0xff]
    %vm55 = vcmask 130048
    %56 = vst.msk [vmem:[#allocation2] sm:$0xff] %vm55, %v43
    %57 = vst.msk [vmem:[#allocation2 + $0x8] sm:$0xff] %vm55, %v44
    %58 = vst.msk [vmem:[#allocation2 + $0x18] sm:$0xff] %vm55, %v45
    %59 = vst.msk [vmem:[#allocation2 + $0x20] sm:$0xff] %vm55, %v46
    %60 = vst.msk [vmem:[#allocation2 + $0x30] sm:$0xff] %vm55, %v47
    %61 = vst.msk [vmem:[#allocation2 + $0x38] sm:$0xff] %vm55, %v48
    %62 = vst.msk [vmem:[#allocation2 + $0x48] sm:$0xff] %vm55, %v49
    %63 = vst.msk [vmem:[#allocation2 + $0x50] sm:$0xff] %vm55, %v50
    %64 = vst.msk [vmem:[#allocation2 + $0x60] sm:$0xff] %vm55, %v51
    %65 = vst.msk [vmem:[#allocation2 + $0x68] sm:$0xff] %vm55, %v52
    %66 = vst.msk [vmem:[#allocation2 + $0x78] sm:$0xff] %vm55, %v53
    %67 = vst.msk [vmem:[#allocation2 + $0x80] sm:$0xff] %vm55, %v54
    %v68 = vld [vmem:[#allocation2] sm:$0xff]
    %v69 = vld [vmem:[#allocation2 + $0x8] sm:$0xff]
    %v70 = vld [vmem:[#allocation2 + $0x10] sm:$0xff]
    %v71 = vld [vmem:[#allocation2 + $0x18] sm:$0xff]
    %v72 = vld [vmem:[#allocation2 + $0x20] sm:$0xff]
    %v73 = vld [vmem:[#allocation2 + $0x28] sm:$0xff]
    %v74 = vld [vmem:[#allocation2 + $0x30] sm:$0xff]
    %v75 = vld [vmem:[#allocation2 + $0x38] sm:$0xff]
    %v76 = vld [vmem:[#allocation2 + $0x40] sm:$0xff]
    %v77 = vld [vmem:[#allocation2 + $0x48] sm:$0xff]
    %v78 = vld [vmem:[#allocation2 + $0x50] sm:$0xff]
    %v79 = vld [vmem:[#allocation2 + $0x58] sm:$0xff]
    %v80 = vld [vmem:[#allocation2 + $0x60] sm:$0xff]
    %v81 = vld [vmem:[#allocation2 + $0x68] sm:$0xff]
    %v82 = vld [vmem:[#allocation2 + $0x70] sm:$0xff]
    %v83 = vld [vmem:[#allocation2 + $0x78] sm:$0xff]
    %v84 = vld [vmem:[#allocation2 + $0x80] sm:$0xff]
    %v85 = vld [vmem:[#allocation2 + $0x88] sm:$0xff]
    %86 = vrot.lane.b32.xlu0 %v68, 4
    %v87 = vpop.permute.xlu0 %86
    %88 = vrot.lane.b32.xlu0 %v69, 4
    %v89 = vpop.permute.xlu0 %88
    %90 = vrot.lane.b32.xlu0 %v70, 4
    %v91 = vpop.permute.xlu0 %90
    %92 = vrot.lane.b32.xlu0 %v71, 4
    %v93 = vpop.permute.xlu0 %92
    %94 = vrot.lane.b32.xlu0 %v72, 4
    %v95 = vpop.permute.xlu0 %94
    %96 = vrot.lane.b32.xlu0 %v73, 4
    %v97 = vpop.permute.xlu0 %96
    %98 = vrot.lane.b32.xlu0 %v74, 4
    %v99 = vpop.permute.xlu0 %98
    %100 = vrot.lane.b32.xlu0 %v75, 4
    %v101 = vpop.permute.xlu0 %100
    %102 = vrot.lane.b32.xlu0 %v76, 4
    %v103 = vpop.permute.xlu0 %102
    %104 = vrot.lane.b32.xlu0 %v77, 4
    %v105 = vpop.permute.xlu0 %104
    %106 = vrot.lane.b32.xlu0 %v78, 4
    %v107 = vpop.permute.xlu0 %106
    %108 = vrot.lane.b32.xlu0 %v79, 4
    %v109 = vpop.permute.xlu0 %108
    %110 = vrot.lane.b32.xlu0 %v80, 4
    %v111 = vpop.permute.xlu0 %110
    %112 = vrot.lane.b32.xlu0 %v81, 4
    %v113 = vpop.permute.xlu0 %112
    %114 = vrot.lane.b32.xlu0 %v82, 4
    %v115 = vpop.permute.xlu0 %114
    %116 = vrot.lane.b32.xlu0 %v83, 4
    %v117 = vpop.permute.xlu0 %116
    %118 = vrot.lane.b32.xlu0 %v84, 4
    %v119 = vpop.permute.xlu0 %118
    %120 = vrot.lane.b32.xlu0 %v85, 4
    %v121 = vpop.permute.xlu0 %120
    %v122 = vadd.f32 %v87, %v68
    %v123 = vadd.f32 %v89, %v69
    %v124 = vadd.f32 %v91, %v70
    %v125 = vadd.f32 %v93, %v71
    %v126 = vadd.f32 %v95, %v72
    %v127 = vadd.f32 %v97, %v73
    %v128 = vadd.f32 %v99, %v74
    %v129 = vadd.f32 %v101, %v75
    %v130 = vadd.f32 %v103, %v76
    %v131 = vadd.f32 %v105, %v77
    %v132 = vadd.f32 %v107, %v78
    %v133 = vadd.f32 %v109, %v79
    %v134 = vadd.f32 %v111, %v80
    %v135 = vadd.f32 %v113, %v81
    %v136 = vadd.f32 %v115, %v82
    %v137 = vadd.f32 %v117, %v83
    %v138 = vadd.f32 %v119, %v84
    %v139 = vadd.f32 %v121, %v85
    %v140 = vmul.f32 %v122, 0.026913157
    %v141 = vmul.f32 %v123, 0.026913157
    %v142 = vmul.f32 %v124, 0.026913157
    %v143 = vmul.f32 %v125, 0.026913157
    %v144 = vmul.f32 %v126, 0.026913157
    %v145 = vmul.f32 %v127, 0.026913157
    %v146 = vmul.f32 %v128, 0.026913157
    %v147 = vmul.f32 %v129, 0.026913157
    %v148 = vmul.f32 %v130, 0.026913157
    %v149 = vmul.f32 %v131, 0.026913157
    %v150 = vmul.f32 %v132, 0.026913157
    %v151 = vmul.f32 %v133, 0.026913157
    %v152 = vmul.f32 %v134, 0.026913157
    %v153 = vmul.f32 %v135, 0.026913157
    %v154 = vmul.f32 %v136, 0.026913157
    %v155 = vmul.f32 %v137, 0.026913157
    %v156 = vmul.f32 %v138, 0.026913157
    %v157 = vmul.f32 %v139, 0.026913157
    %158 = vrot.lane.b32.xlu0 %v68, 3
    %v159 = vpop.permute.xlu0 %158
    %160 = vrot.lane.b32.xlu0 %v69, 3
    %v161 = vpop.permute.xlu0 %160
    %162 = vrot.lane.b32.xlu0 %v70, 3
    %v163 = vpop.permute.xlu0 %162
    %164 = vrot.lane.b32.xlu0 %v71, 3
    %v165 = vpop.permute.xlu0 %164
    %166 = vrot.lane.b32.xlu0 %v72, 3
    %v167 = vpop.permute.xlu0 %166
    %168 = vrot.lane.b32.xlu0 %v73, 3
    %v169 = vpop.permute.xlu0 %168
    %170 = vrot.lane.b32.xlu0 %v74, 3
    %v171 = vpop.permute.xlu0 %170
    %172 = vrot.lane.b32.xlu0 %v75, 3
    %v173 = vpop.permute.xlu0 %172
    %174 = vrot.lane.b32.xlu0 %v76, 3
    %v175 = vpop.permute.xlu0 %174
    %176 = vrot.lane.b32.xlu0 %v77, 3
    %v177 = vpop.permute.xlu0 %176
    %178 = vrot.lane.b32.xlu0 %v78, 3
    %v179 = vpop.permute.xlu0 %178
    %180 = vrot.lane.b32.xlu0 %v79, 3
    %v181 = vpop.permute.xlu0 %180
    %182 = vrot.lane.b32.xlu0 %v80, 3
    %v183 = vpop.permute.xlu0 %182
    %184 = vrot.lane.b32.xlu0 %v81, 3
    %v185 = vpop.permute.xlu0 %184
    %186 = vrot.lane.b32.xlu0 %v82, 3
    %v187 = vpop.permute.xlu0 %186
    %188 = vrot.lane.b32.xlu0 %v83, 3
    %v189 = vpop.permute.xlu0 %188
    %190 = vrot.lane.b32.xlu0 %v84, 3
    %v191 = vpop.permute.xlu0 %190
    %192 = vrot.lane.b32.xlu0 %v85, 3
    %v193 = vpop.permute.xlu0 %192
    %194 = vrot.lane.b32.xlu0 %v68, 1
    %v195 = vpop.permute.xlu0 %194
    %196 = vrot.lane.b32.xlu0 %v69, 1
    %v197 = vpop.permute.xlu0 %196
    %198 = vrot.lane.b32.xlu0 %v70, 1
    %v199 = vpop.permute.xlu0 %198
    %200 = vrot.lane.b32.xlu0 %v71, 1
    %v201 = vpop.permute.xlu0 %200
    %202 = vrot.lane.b32.xlu0 %v72, 1
    %v203 = vpop.permute.xlu0 %202
    %204 = vrot.lane.b32.xlu0 %v73, 1
    %v205 = vpop.permute.xlu0 %204
    %206 = vrot.lane.b32.xlu0 %v74, 1
    %v207 = vpop.permute.xlu0 %206
    %208 = vrot.lane.b32.xlu0 %v75, 1
    %v209 = vpop.permute.xlu0 %208
    %210 = vrot.lane.b32.xlu0 %v76, 1
    %v211 = vpop.permute.xlu0 %210
    %212 = vrot.lane.b32.xlu0 %v77, 1
    %v213 = vpop.permute.xlu0 %212
    %214 = vrot.lane.b32.xlu0 %v78, 1
    %v215 = vpop.permute.xlu0 %214
    %216 = vrot.lane.b32.xlu0 %v79, 1
    %v217 = vpop.permute.xlu0 %216
    %218 = vrot.lane.b32.xlu0 %v80, 1
    %v219 = vpop.permute.xlu0 %218
    %220 = vrot.lane.b32.xlu0 %v81, 1
    %v221 = vpop.permute.xlu0 %220
    %222 = vrot.lane.b32.xlu0 %v82, 1
    %v223 = vpop.permute.xlu0 %222
    %224 = vrot.lane.b32.xlu0 %v83, 1
    %v225 = vpop.permute.xlu0 %224
    %226 = vrot.lane.b32.xlu0 %v84, 1
    %v227 = vpop.permute.xlu0 %226
    %228 = vrot.lane.b32.xlu0 %v85, 1
    %v229 = vpop.permute.xlu0 %228
    %v230 = vadd.f32 %v159, %v195
    %v231 = vadd.f32 %v161, %v197
    %v232 = vadd.f32 %v163, %v199
    %v233 = vadd.f32 %v165, %v201
    %v234 = vadd.f32 %v167, %v203
    %v235 = vadd.f32 %v169, %v205
    %v236 = vadd.f32 %v171, %v207
    %v237 = vadd.f32 %v173, %v209
    %v238 = vadd.f32 %v175, %v211
    %v239 = vadd.f32 %v177, %v213
    %v240 = vadd.f32 %v179, %v215
    %v241 = vadd.f32 %v181, %v217
    %v242 = vadd.f32 %v183, %v219
    %v243 = vadd.f32 %v185, %v221
    %v244 = vadd.f32 %v187, %v223
    %v245 = vadd.f32 %v189, %v225
    %v246 = vadd.f32 %v191, %v227
    %v247 = vadd.f32 %v193, %v229
    %v248 = vmul.f32 %v230, 0.23336768
    %v249 = vmul.f32 %v231, 0.23336768
    %v250 = vmul.f32 %v232, 0.23336768
    %v251 = vmul.f32 %v233, 0.23336768
    %v252 = vmul.f32 %v234, 0.23336768
    %v253 = vmul.f32 %v235, 0.23336768
    %v254 = vmul.f32 %v236, 0.23336768
    %v255 = vmul.f32 %v237, 0.23336768
    %v256 = vmul.f32 %v238, 0.23336768
    %v257 = vmul.f32 %v239, 0.23336768
    %v258 = vmul.f32 %v240, 0.23336768
    %v259 = vmul.f32 %v241, 0.23336768
    %v260 = vmul.f32 %v242, 0.23336768
    %v261 = vmul.f32 %v243, 0.23336768
    %v262 = vmul.f32 %v244, 0.23336768
    %v263 = vmul.f32 %v245, 0.23336768
    %v264 = vmul.f32 %v246, 0.23336768
    %v265 = vmul.f32 %v247, 0.23336768
    %v266 = vadd.f32 %v140, %v248
    %v267 = vadd.f32 %v141, %v249
    %v268 = vadd.f32 %v142, %v250
    %v269 = vadd.f32 %v143, %v251
    %v270 = vadd.f32 %v144, %v252
    %v271 = vadd.f32 %v145, %v253
    %v272 = vadd.f32 %v146, %v254
    %v273 = vadd.f32 %v147, %v255
    %v274 = vadd.f32 %v148, %v256
    %v275 = vadd.f32 %v149, %v257
    %v276 = vadd.f32 %v150, %v258
    %v277 = vadd.f32 %v151, %v259
    %v278 = vadd.f32 %v152, %v260
    %v279 = vadd.f32 %v153, %v261
    %v280 = vadd.f32 %v154, %v262
    %v281 = vadd.f32 %v155, %v263
    %v282 = vadd.f32 %v156, %v264
    %v283 = vadd.f32 %v157, %v265
    %284 = vrot.lane.b32.xlu0 %v68, 2
    %v285 = vpop.permute.xlu0 %284
    %286 = vrot.lane.b32.xlu0 %v69, 2
    %v287 = vpop.permute.xlu0 %286
    %288 = vrot.lane.b32.xlu0 %v70, 2
    %v289 = vpop.permute.xlu0 %288
    %290 = vrot.lane.b32.xlu0 %v71, 2
    %v291 = vpop.permute.xlu0 %290
    %292 = vrot.lane.b32.xlu0 %v72, 2
    %v293 = vpop.permute.xlu0 %292
    %294 = vrot.lane.b32.xlu0 %v73, 2
    %v295 = vpop.permute.xlu0 %294
    %296 = vrot.lane.b32.xlu0 %v74, 2
    %v297 = vpop.permute.xlu0 %296
    %298 = vrot.lane.b32.xlu0 %v75, 2
    %v299 = vpop.permute.xlu0 %298
    %300 = vrot.lane.b32.xlu0 %v76, 2
    %v301 = vpop.permute.xlu0 %300
    %302 = vrot.lane.b32.xlu0 %v77, 2
    %v303 = vpop.permute.xlu0 %302
    %304 = vrot.lane.b32.xlu0 %v78, 2
    %v305 = vpop.permute.xlu0 %304
    %306 = vrot.lane.b32.xlu0 %v79, 2
    %v307 = vpop.permute.xlu0 %306
    %308 = vrot.lane.b32.xlu0 %v80, 2
    %v309 = vpop.permute.xlu0 %308
    %310 = vrot.lane.b32.xlu0 %v81, 2
    %v311 = vpop.permute.xlu0 %310
    %312 = vrot.lane.b32.xlu0 %v82, 2
    %v313 = vpop.permute.xlu0 %312
    %314 = vrot.lane.b32.xlu0 %v83, 2
    %v315 = vpop.permute.xlu0 %314
    %316 = vrot.lane.b32.xlu0 %v84, 2
    %v317 = vpop.permute.xlu0 %316
    %318 = vrot.lane.b32.xlu0 %v85, 2
    %v319 = vpop.permute.xlu0 %318
    %v320 = vmul.f32 %v285, 0.4794383
    %v321 = vmul.f32 %v287, 0.4794383
    %v322 = vmul.f32 %v289, 0.4794383
    %v323 = vmul.f32 %v291, 0.4794383
    %v324 = vmul.f32 %v293, 0.4794383
    %v325 = vmul.f32 %v295, 0.4794383
    %v326 = vmul.f32 %v297, 0.4794383
    %v327 = vmul.f32 %v299, 0.4794383
    %v328 = vmul.f32 %v301, 0.4794383
    %v329 = vmul.f32 %v303, 0.4794383
    %v330 = vmul.f32 %v305, 0.4794383
    %v331 = vmul.f32 %v307, 0.4794383
    %v332 = vmul.f32 %v309, 0.4794383
    %v333 = vmul.f32 %v311, 0.4794383
    %v334 = vmul.f32 %v313, 0.4794383
    %v335 = vmul.f32 %v315, 0.4794383
    %v336 = vmul.f32 %v317, 0.4794383
    %v337 = vmul.f32 %v319, 0.4794383
    %v338 = vadd.f32 %v266, %v320
    %v339 = vadd.f32 %v267, %v321
    %v340 = vadd.f32 %v268, %v322
    %v341 = vadd.f32 %v269, %v323
    %v342 = vadd.f32 %v270, %v324
    %v343 = vadd.f32 %v271, %v325
    %v344 = vadd.f32 %v272, %v326
    %v345 = vadd.f32 %v273, %v327
    %v346 = vadd.f32 %v274, %v328
    %v347 = vadd.f32 %v275, %v329
    %v348 = vadd.f32 %v276, %v330
    %v349 = vadd.f32 %v277, %v331
    %v350 = vadd.f32 %v278, %v332
    %v351 = vadd.f32 %v279, %v333
    %v352 = vadd.f32 %v280, %v334
    %v353 = vadd.f32 %v281, %v335
    %v354 = vadd.f32 %v282, %v336
    %v355 = vadd.f32 %v283, %v337
    %v356 = vrot.slane %v338, 4
    %v357 = vrot.slane %v341, 4
    %v358 = vrot.slane %v344, 4
    %v359 = vrot.slane %v347, 4
    %v360 = vrot.slane %v350, 4
    %v361 = vrot.slane %v353, 4
    %v362 = vrot.slane %v339, 4
    %v363 = vrot.slane %v342, 4
    %v364 = vrot.slane %v345, 4
    %v365 = vrot.slane %v348, 4
    %v366 = vrot.slane %v351, 4
    %v367 = vrot.slane %v354, 4
    %v368 = vrot.slane %v340, 4
    %v369 = vrot.slane %v343, 4
    %v370 = vrot.slane %v346, 4
    %v371 = vrot.slane %v349, 4
    %v372 = vrot.slane %v352, 4
    %v373 = vrot.slane %v355, 4
    %v374 = vlaneseq
    %v375 = vshrl.u32 %v374, 7
    %vm376 = vcmp.lt.s32.totalorder %v375, 4
    %v377 = vsel %vm376, %v362, %v368
    %v378 = vsel %vm376, %v363, %v369
    %v379 = vsel %vm376, %v364, %v370
    %v380 = vsel %vm376, %v365, %v371
    %v381 = vsel %vm376, %v366, %v372
    %v382 = vsel %vm376, %v367, %v373
    %v383 = vsel %vm376, %v356, %v362
    %v384 = vsel %vm376, %v357, %v363
    %v385 = vsel %vm376, %v358, %v364
    %v386 = vsel %vm376, %v359, %v365
    %v387 = vsel %vm376, %v360, %v366
    %v388 = vsel %vm376, %v361, %v367
    %v389 = vsel %vm376, %v368, %v356
    %v390 = vsel %vm376, %v369, %v357
    %v391 = vsel %vm376, %v370, %v358
    %v392 = vsel %vm376, %v371, %v359
    %v393 = vsel %vm376, %v372, %v360
    %v394 = vsel %vm376, %v373, %v361
    %v395 = vadd.f32 %v389, %v338
    %v396 = vadd.f32 %v383, %v339
    %v397 = vadd.f32 %v377, %v340
    %v398 = vadd.f32 %v390, %v341
    %v399 = vadd.f32 %v384, %v342
    %v400 = vadd.f32 %v378, %v343
    %v401 = vadd.f32 %v391, %v344
    %v402 = vadd.f32 %v385, %v345
    %v403 = vadd.f32 %v379, %v346
    %v404 = vadd.f32 %v392, %v347
    %v405 = vadd.f32 %v386, %v348
    %v406 = vadd.f32 %v380, %v349
    %v407 = vadd.f32 %v393, %v350
    %v408 = vadd.f32 %v387, %v351
    %v409 = vadd.f32 %v381, %v352
    %v410 = vadd.f32 %v394, %v353
    %v411 = vadd.f32 %v388, %v354
    %v412 = vadd.f32 %v382, %v355
    %v413 = vmul.f32 %v395, 0.026913157
    %v414 = vmul.f32 %v396, 0.026913157
    %v415 = vmul.f32 %v397, 0.026913157
    %v416 = vmul.f32 %v398, 0.026913157
    %v417 = vmul.f32 %v399, 0.026913157
    %v418 = vmul.f32 %v400, 0.026913157
    %v419 = vmul.f32 %v401, 0.026913157
    %v420 = vmul.f32 %v402, 0.026913157
    %v421 = vmul.f32 %v403, 0.026913157
    %v422 = vmul.f32 %v404, 0.026913157
    %v423 = vmul.f32 %v405, 0.026913157
    %v424 = vmul.f32 %v406, 0.026913157
    %v425 = vmul.f32 %v407, 0.026913157
    %v426 = vmul.f32 %v408, 0.026913157
    %v427 = vmul.f32 %v409, 0.026913157
    %v428 = vmul.f32 %v410, 0.026913157
    %v429 = vmul.f32 %v411, 0.026913157
    %v430 = vmul.f32 %v412, 0.026913157
    %v431 = vrot.slane %v338, 5
    %v432 = vrot.slane %v341, 5
    %v433 = vrot.slane %v344, 5
    %v434 = vrot.slane %v347, 5
    %v435 = vrot.slane %v350, 5
    %v436 = vrot.slane %v353, 5
    %v437 = vrot.slane %v339, 5
    %v438 = vrot.slane %v342, 5
    %v439 = vrot.slane %v345, 5
    %v440 = vrot.slane %v348, 5
    %v441 = vrot.slane %v351, 5
    %v442 = vrot.slane %v354, 5
    %v443 = vrot.slane %v340, 5
    %v444 = vrot.slane %v343, 5
    %v445 = vrot.slane %v346, 5
    %v446 = vrot.slane %v349, 5
    %v447 = vrot.slane %v352, 5
    %v448 = vrot.slane %v355, 5
    %vm449 = vcmp.lt.s32.totalorder %v375, 3
    %v450 = vsel %vm449, %v437, %v443
    %v451 = vsel %vm449, %v438, %v444
    %v452 = vsel %vm449, %v439, %v445
    %v453 = vsel %vm449, %v440, %v446
    %v454 = vsel %vm449, %v441, %v447
    %v455 = vsel %vm449, %v442, %v448
    %v456 = vsel %vm449, %v431, %v437
    %v457 = vsel %vm449, %v432, %v438
    %v458 = vsel %vm449, %v433, %v439
    %v459 = vsel %vm449, %v434, %v440
    %v460 = vsel %vm449, %v435, %v441
    %v461 = vsel %vm449, %v436, %v442
    %v462 = vsel %vm449, %v443, %v431
    %v463 = vsel %vm449, %v444, %v432
    %v464 = vsel %vm449, %v445, %v433
    %v465 = vsel %vm449, %v446, %v434
    %v466 = vsel %vm449, %v447, %v435
    %v467 = vsel %vm449, %v448, %v436
    %v468 = vrot.slane %v338, 7
    %v469 = vrot.slane %v341, 7
    %v470 = vrot.slane %v344, 7
    %v471 = vrot.slane %v347, 7
    %v472 = vrot.slane %v350, 7
    %v473 = vrot.slane %v353, 7
    %v474 = vrot.slane %v339, 7
    %v475 = vrot.slane %v342, 7
    %v476 = vrot.slane %v345, 7
    %v477 = vrot.slane %v348, 7
    %v478 = vrot.slane %v351, 7
    %v479 = vrot.slane %v354, 7
    %v480 = vrot.slane %v340, 7
    %v481 = vrot.slane %v343, 7
    %v482 = vrot.slane %v346, 7
    %v483 = vrot.slane %v349, 7
    %v484 = vrot.slane %v352, 7
    %v485 = vrot.slane %v355, 7
    %vm486 = vcmp.lt.s32.totalorder %v375, 1
    %v487 = vsel %vm486, %v474, %v480
    %v488 = vsel %vm486, %v475, %v481
    %v489 = vsel %vm486, %v476, %v482
    %v490 = vsel %vm486, %v477, %v483
    %v491 = vsel %vm486, %v478, %v484
    %v492 = vsel %vm486, %v479, %v485
    %v493 = vsel %vm486, %v468, %v474
    %v494 = vsel %vm486, %v469, %v475
    %v495 = vsel %vm486, %v470, %v476
    %v496 = vsel %vm486, %v471, %v477
    %v497 = vsel %vm486, %v472, %v478
    %v498 = vsel %vm486, %v473, %v479
    %v499 = vsel %vm486, %v480, %v468
    %v500 = vsel %vm486, %v481, %v469
    %v501 = vsel %vm486, %v482, %v470
    %v502 = vsel %vm486, %v483, %v471
    %v503 = vsel %vm486, %v484, %v472
    %v504 = vsel %vm486, %v485, %v473
    %v505 = vadd.f32 %v462, %v499
    %v506 = vadd.f32 %v456, %v493
    %v507 = vadd.f32 %v450, %v487
    %v508 = vadd.f32 %v463, %v500
    %v509 = vadd.f32 %v457, %v494
    %v510 = vadd.f32 %v451, %v488
    %v511 = vadd.f32 %v464, %v501
    %v512 = vadd.f32 %v458, %v495
    %v513 = vadd.f32 %v452, %v489
    %v514 = vadd.f32 %v465, %v502
    %v515 = vadd.f32 %v459, %v496
    %v516 = vadd.f32 %v453, %v490
    %v517 = vadd.f32 %v466, %v503
    %v518 = vadd.f32 %v460, %v497
    %v519 = vadd.f32 %v454, %v491
    %v520 = vadd.f32 %v467, %v504
    %v521 = vadd.f32 %v461, %v498
    %v522 = vadd.f32 %v455, %v492
    %v523 = vmul.f32 %v505, 0.23336768
    %v524 = vmul.f32 %v506, 0.23336768
    %v525 = vmul.f32 %v507, 0.23336768
    %v526 = vmul.f32 %v508, 0.23336768
    %v527 = vmul.f32 %v509, 0.23336768
    %v528 = vmul.f32 %v510, 0.23336768
    %v529 = vmul.f32 %v511, 0.23336768
    %v530 = vmul.f32 %v512, 0.23336768
    %v531 = vmul.f32 %v513, 0.23336768
    %v532 = vmul.f32 %v514, 0.23336768
    %v533 = vmul.f32 %v515, 0.23336768
    %v534 = vmul.f32 %v516, 0.23336768
    %v535 = vmul.f32 %v517, 0.23336768
    %v536 = vmul.f32 %v518, 0.23336768
    %v537 = vmul.f32 %v519, 0.23336768
    %v538 = vmul.f32 %v520, 0.23336768
    %v539 = vmul.f32 %v521, 0.23336768
    %v540 = vmul.f32 %v522, 0.23336768
    %v541 = vadd.f32 %v413, %v523
    %v542 = vadd.f32 %v414, %v524
    %v543 = vadd.f32 %v415, %v525
    %v544 = vadd.f32 %v416, %v526
    %v545 = vadd.f32 %v417, %v527
    %v546 = vadd.f32 %v418, %v528
    %v547 = vadd.f32 %v419, %v529
    %v548 = vadd.f32 %v420, %v530
    %v549 = vadd.f32 %v421, %v531
    %v550 = vadd.f32 %v422, %v532
    %v551 = vadd.f32 %v423, %v533
    %v552 = vadd.f32 %v424, %v534
    %v553 = vadd.f32 %v425, %v535
    %v554 = vadd.f32 %v426, %v536
    %v555 = vadd.f32 %v427, %v537
    %v556 = vadd.f32 %v428, %v538
    %v557 = vadd.f32 %v429, %v539
    %v558 = vadd.f32 %v430, %v540
    %v559 = vrot.slane %v338, 6
    %v560 = vrot.slane %v341, 6
    %v561 = vrot.slane %v344, 6
    %v562 = vrot.slane %v347, 6
    %v563 = vrot.slane %v350, 6
    %v564 = vrot.slane %v353, 6
    %v565 = vrot.slane %v339, 6
    %v566 = vrot.slane %v342, 6
    %v567 = vrot.slane %v345, 6
    %v568 = vrot.slane %v348, 6
    %v569 = vrot.slane %v351, 6
    %v570 = vrot.slane %v354, 6
    %v571 = vrot.slane %v340, 6
    %v572 = vrot.slane %v343, 6
    %v573 = vrot.slane %v346, 6
    %v574 = vrot.slane %v349, 6
    %v575 = vrot.slane %v352, 6
    %v576 = vrot.slane %v355, 6
    %vm577 = vcmp.lt.s32.totalorder %v375, 2
    %v578 = vsel %vm577, %v565, %v571
    %v579 = vsel %vm577, %v566, %v572
    %v580 = vsel %vm577, %v567, %v573
    %v581 = vsel %vm577, %v568, %v574
    %v582 = vsel %vm577, %v569, %v575
    %v583 = vsel %vm577, %v570, %v576
    %v584 = vsel %vm577, %v559, %v565
    %v585 = vsel %vm577, %v560, %v566
    %v586 = vsel %vm577, %v561, %v567
    %v587 = vsel %vm577, %v562, %v568
    %v588 = vsel %vm577, %v563, %v569
    %v589 = vsel %vm577, %v564, %v570
    %v590 = vsel %vm577, %v571, %v559
    %v591 = vsel %vm577, %v572, %v560
    %v592 = vsel %vm577, %v573, %v561
    %v593 = vsel %vm577, %v574, %v562
    %v594 = vsel %vm577, %v575, %v563
    %v595 = vsel %vm577, %v576, %v564
    %v596 = vmul.f32 %v590, 0.4794383
    %v597 = vmul.f32 %v584, 0.4794383
    %v598 = vmul.f32 %v578, 0.4794383
    %v599 = vmul.f32 %v591, 0.4794383
    %v600 = vmul.f32 %v585, 0.4794383
    %v601 = vmul.f32 %v579, 0.4794383
    %v602 = vmul.f32 %v592, 0.4794383
    %v603 = vmul.f32 %v586, 0.4794383
    %v604 = vmul.f32 %v580, 0.4794383
    %v605 = vmul.f32 %v593, 0.4794383
    %v606 = vmul.f32 %v587, 0.4794383
    %v607 = vmul.f32 %v581, 0.4794383
    %v608 = vmul.f32 %v594, 0.4794383
    %v609 = vmul.f32 %v588, 0.4794383
    %v610 = vmul.f32 %v582, 0.4794383
    %v611 = vmul.f32 %v595, 0.4794383
    %v612 = vmul.f32 %v589, 0.4794383
    %v613 = vmul.f32 %v583, 0.4794383
    %v614 = vadd.f32 %v541, %v596
    %v615 = vadd.f32 %v542, %v597
    %v616 = vadd.f32 %v543, %v598
    %v617 = vadd.f32 %v544, %v599
    %v618 = vadd.f32 %v545, %v600
    %v619 = vadd.f32 %v546, %v601
    %v620 = vadd.f32 %v547, %v602
    %v621 = vadd.f32 %v548, %v603
    %v622 = vadd.f32 %v549, %v604
    %v623 = vadd.f32 %v550, %v605
    %v624 = vadd.f32 %v551, %v606
    %v625 = vadd.f32 %v552, %v607
    %v626 = vadd.f32 %v553, %v608
    %v627 = vadd.f32 %v554, %v609
    %v628 = vadd.f32 %v555, %v610
    %v629 = vadd.f32 %v556, %v611
    %v630 = vadd.f32 %v557, %v612
    %v631 = vadd.f32 %v558, %v613
    %vm632 = vcmask 162816
    %633 = vst.msk [vmem:[%s1] sm:$0xff] %vm632, %v614
    %634 = vst.msk [vmem:[%s1 + $0x8] sm:$0xff] %vm632, %v615
    %vm635 = vcmask 158720
    %636 = vst.msk [vmem:[%s1 + $0x10] sm:$0xf] %vm635, %v616
    %637 = vst.msk [vmem:[%s1 + $0x18] sm:$0xff] %vm632, %v617
    %638 = vst.msk [vmem:[%s1 + $0x20] sm:$0xff] %vm632, %v618
    %639 = vst.msk [vmem:[%s1 + $0x28] sm:$0xf] %vm635, %v619
    %640 = vst.msk [vmem:[%s1 + $0x30] sm:$0xff] %vm632, %v620
    %641 = vst.msk [vmem:[%s1 + $0x38] sm:$0xff] %vm632, %v621
    %642 = vst.msk [vmem:[%s1 + $0x40] sm:$0xf] %vm635, %v622
    %643 = vst.msk [vmem:[%s1 + $0x48] sm:$0xff] %vm632, %v623
    %644 = vst.msk [vmem:[%s1 + $0x50] sm:$0xff] %vm632, %v624
    %645 = vst.msk [vmem:[%s1 + $0x58] sm:$0xf] %vm635, %v625
    %646 = vst.msk [vmem:[%s1 + $0x60] sm:$0xff] %vm632, %v626
    %647 = vst.msk [vmem:[%s1 + $0x68] sm:$0xff] %vm632, %v627
    %648 = vst.msk [vmem:[%s1 + $0x70] sm:$0xf] %vm635, %v628
    %649 = vst.msk [vmem:[%s1 + $0x78] sm:$0xff] %vm632, %v629
    %650 = vst.msk [vmem:[%s1 + $0x80] sm:$0xff] %vm632, %v630
    %651 = vst.msk [vmem:[%s1 + $0x88] sm:$0xf] %vm635, %v631
    // Predicated region
    $region10: #{gaussian_filter.1} parent=1 // pred_check
      _
    $region11: #{gaussian_filter.1} parent=1 // pred_check_branch
      %653 = sbr.rel (0) target = $region13
    $region12: #{gaussian_filter.1} parent=1 // pred_region
      _
    $region13: #{gaussian_filter.1} parent=1 // pred_fallthru
      _
    // Predicated region
    $region14: #{gaussian_filter.1} parent=1 // pred_check
      _
    $region15: #{gaussian_filter.1} parent=1 // pred_check_branch
      %655 = sbr.rel (0) target = $region17
    $region16: #{gaussian_filter.1} parent=1 // pred_region
      _
    $region17: #{gaussian_filter.1} parent=1 // pred_fallthru
      _
    %656 = vsyncpa [#allocation4], 1

</llo_original>
